<compile_context>
chip_gen: v6e
topology: v6e:2x2x1
jax: 0.10.0
libtpu: 0.0.40
codegen_flags: <defaults>
</compile_context>

<pallas_src>
import functools

import jax
import jax.numpy as jnp
from jax.experimental import pallas as pl
from jax.experimental.pallas import tpu as pltpu


def _head_kernel(x_ref, w_ref, b_ref, pooled_ref, out_ref, *, inv_s):
    """One (batch-block i, frame-chunk j) grid step.

    x_ref:      (TB, TC, C, HW)  raw NCHW backbone features
    w_ref:      (C, N)           classifier.weight.T (resident in VMEM)
    b_ref:      (1, N)           classifier.bias     (resident in VMEM)
    pooled_ref: (TB, C)  f32     pooled features; doubles as the reduction accumulator
    out_ref:    (TB, N)  f32     logits
    """
    j = pl.program_id(1)

    # Mean over (T, H, W) is order-invariant, so the raw NCHW layout is consumed
    # directly (no view/permute/transpose).  Sum the frame axis first (cheap VPU
    # adds across a leading block dim), then do a single lane (HW) reduce on the
    # XLU per (row, channel).
    x = x_ref[...].astype(jnp.float32)          # (TB, TC, C, HW)
    s = jnp.sum(x, axis=1)                      # (TB, C, HW)   VPU adds over frames
    chunk = jnp.sum(s, axis=-1)                 # (TB, C)       XLU lane reduce

    @pl.when(j == 0)
    def _init():
        pooled_ref[...] = jnp.zeros_like(pooled_ref)

    pooled_ref[...] += chunk                    # f32 accumulation, resident in VMEM

    @pl.when(j == pl.num_programs(1) - 1)
    def _finalize():
        pooled = pooled_ref[...] * inv_s        # adaptive_avg_pool3d(1): mean over T*H*W
        pooled_ref[...] = pooled
        logits = jnp.dot(pooled, w_ref[...],    # batched (TB, C) @ (C, N) on the MXU
                         preferred_element_type=jnp.float32)
        out_ref[...] = (logits + b_ref[...]).astype(out_ref.dtype)


def _pick_tiles(B, T, C, HW, itemsize, feat_budget):
    """Choose (TB batch rows, TC frames) per block within the VMEM feature budget."""
    # Bytes per block: 2x double-buffered input tile + f32 working copy/partial sums.
    def block_bytes(tb, tc):
        return tb * C * HW * (tc * (2 * itemsize + 4) + 4)

    def fits(tb, tc):
        return block_bytes(tb, tc) <= feat_budget

    # Batch-block candidates.  Every candidate is either == B or a multiple of 8, so
    # the (TB, C)/(TB, N) output blocks satisfy the (8, 128) sublane rule.  For
    # B >= 16 prefer >= 2 batch blocks so both v7x TensorCores get work.
    cands = []
    if B >= 16:
        cands.append((B // 2) // 8 * 8)
    cands.append(B)
    cands.extend(8 * k for k in range(B // 8, 0, -1))
    seen, ordered = set(), []
    for c in cands:
        if c > 0 and c not in seen:
            seen.add(c)
            ordered.append(c)

    for tb in ordered:
        if fits(tb, T):
            return tb, T                         # full-T block: single reduction step

    # Even the smallest legal batch block does not fit with the full T extent:
    # chunk the frame axis (a leading block dim -> no lane/sublane constraint).
    tb = B if B <= 8 else 8
    for tc in (d for d in range(T, 0, -1) if T % d == 0):
        if fits(tb, tc):
            return tb, tc
    return tb, 1


def fclassifier_head(features_nchw, B, weight, bias):
    """FClassifier head on raw backbone features.

    features_nchw: (B*T, C, H, W)  output of resnet18(modality='flow'), NCHW
                   (f32 or bf16 — bf16 halves HBM traffic, kernel accumulates in f32)
    weight:        (N, C)          nn.Linear weight (PyTorch layout)
    bias:          (N,)            nn.Linear bias
    Returns (pooled (B, C), logits (B, N)) == the module's (v, out), in f32.
    """
    BT, C, H, W = features_nchw.shape
    assert BT % B == 0, f"B*T={BT} is not divisible by B={B}"
    T = BT // B
    HW = H * W
    N, C_w = weight.shape
    assert C_w == C, f"classifier expects embed_dim={C_w}, backbone gave C={C}"

    # Free row-major reshapes (leading split + trailing merge): no HBM transpose.
    x = features_nchw.reshape(B, T, C, HW)
    w_t = weight.T                 # (C, N), tiny host-side transpose
    b2 = bias.reshape(1, N)

    itemsize = jnp.dtype(x.dtype).itemsize

    # Generation-aware VMEM budget: v7x has 64 MiB physical VMEM, v5e/v6e 128 MiB.
    try:
        info = pltpu.get_tpu_info()
        vmem_cap = int(getattr(info, "vmem_capacity_bytes", 0)) or (64 << 20)
    except Exception:  # interpret mode / unknown target
        vmem_cap = 64 << 20
    vmem_target = (vmem_cap * 3) // 4

    # Resident (non-feature) VMEM: weights/bias + output blocks (x2 buffers) + headroom.
    resident = 2 * 4 * (C * N + N) + 2 * 4 * (B * C + B * N) + (2 << 20)
    feat_budget = max(vmem_target - resident, 4 << 20)

    TB, TC = _pick_tiles(B, T, C, HW, itemsize, feat_budget)

    est = 2 * TB * TC * C * HW * itemsize + TB * C * HW * 4 + resident
    vmem_limit = int(min(vmem_target, max(32 << 20, 2 * est)))

    kernel = functools.partial(_head_kernel, inv_s=1.0 / float(T * HW))
    grid = (pl.cdiv(B, TB), T // TC)   # batch blocks parallel, frame chunks (reduction) last

    pooled, out = pl.pallas_call(
        kernel,
        out_shape=(
            jax.ShapeDtypeStruct((B, C), jnp.float32),
            jax.ShapeDtypeStruct((B, N), jnp.float32),
        ),
        grid_spec=pltpu.PrefetchScalarGridSpec(
            num_scalar_prefetch=0,
            grid=grid,
            in_specs=[
                pl.BlockSpec((TB, TC, C, HW), lambda i, j: (i, j, 0, 0)),
                pl.BlockSpec((C, N), lambda i, j: (0, 0)),   # weights resident in VMEM
                pl.BlockSpec((1, N), lambda i, j: (0, 0)),   # bias resident in VMEM
            ],
            out_specs=[
                pl.BlockSpec((TB, C), lambda i, j: (i, 0)),  # resident across frame chunks
                pl.BlockSpec((TB, N), lambda i, j: (i, 0)),  # resident across frame chunks
            ],
        ),
        compiler_params=pltpu.CompilerParams(
            dimension_semantics=("parallel", "arbitrary"),
            vmem_limit_bytes=vmem_limit,
        ),
    )(x, w_t, b2)

    return pooled, out


if __name__ == "__main__":
    # AVMNIST head: n_classes = 10, embed_dim (= backbone channel dim C) = 32,
    # B = 2, T = 2, H = W = 4.
    B, T, C, H, W = 2, 2, 32, 4, 4
    n_classes = 10

    key = jax.random.PRNGKey(0)
    k_feat, k_w, k_b = jax.random.split(key, 3)

    # Stand-in for the resnet18(flow) feature output (B*T, C, H, W), NCHW.
    feats = jax.random.normal(k_feat, (B * T, C, H, W), dtype=jnp.float32)

    # nn.Linear(embed_dim, n_classes): weight (n_classes, C), bias (n_classes,)
    w = jax.random.normal(k_w, (n_classes, C), dtype=jnp.float32) * (1.0 / jnp.sqrt(C))
    b = jax.random.normal(k_b, (n_classes,), dtype=jnp.float32) * 0.01

    pooled, out = fclassifier_head(feats, B, w, b)
    jax.block_until_ready((pooled, out))

    # Pure-JAX reference replicating the PyTorch forward exactly.
    v_ref = (feats.reshape(B, T, C, H, W)
                  .transpose(0, 2, 1, 3, 4)
                  .reshape(B, C, T * H * W)
                  .mean(axis=-1))
    out_ref = v_ref @ w.T + b

    assert pooled.shape == (B, C) and out.shape == (B, n_classes)
    assert jnp.allclose(pooled, v_ref, atol=1e-5, rtol=1e-5)
    assert jnp.allclose(out, out_ref, atol=1e-5, rtol=1e-5)

    print("KERNEL_OK")
</pallas_src>

<mosaic_0001>
module attributes {stable_mosaic.version = 11 : i64} {
  func.func @_head_kernel(%arg0: i32, %arg1: i32, %arg2: memref<2x2x32x16xf32, #tpu.memory_space<vmem>>, %arg3: memref<32x10xf32, #tpu.memory_space<vmem>>, %arg4: memref<1x10xf32, #tpu.memory_space<vmem>>, %arg5: memref<2x32xf32, #tpu.memory_space<vmem>>, %arg6: memref<2x10xf32, #tpu.memory_space<vmem>>) attributes {dimension_semantics = [#tpu.dimension_semantics<parallel>, #tpu.dimension_semantics<arbitrary>], iteration_bounds = array<i64: 1, 1>, scalar_prefetch = 0 : i64, scratch_operands = 0 : i64, tpu.core_type = #tpu.core_type<tc>, window_params = [{transform_indices = @transform_0, window_bounds = array<i64: 2, 2, 32, 16>}, {pipeline_mode = #tpu.pipeline_mode<synchronous>, transform_indices = @transform_1, window_bounds = array<i64: 32, 10>}, {pipeline_mode = #tpu.pipeline_mode<synchronous>, transform_indices = @transform_2, window_bounds = array<i64: 1, 10>}, {transform_indices = @transform_3, window_bounds = array<i64: 2, 32>}, {transform_indices = @transform_4, window_bounds = array<i64: 2, 10>}]} {
    %c0 = arith.constant 0 : index
    %c0_0 = arith.constant 0 : index
    %c0_1 = arith.constant 0 : index
    %c0_2 = arith.constant 0 : index
    %0 = vector.load %arg2[%c0, %c0_0, %c0_1, %c0_2] : memref<2x2x32x16xf32, #tpu.memory_space<vmem>>, vector<2x2x32x16xf32>
    %cst = arith.constant dense<0.000000e+00> : vector<2x32x16xf32>
    %1 = vector.multi_reduction <add>, %0, %cst [1] : vector<2x2x32x16xf32> to vector<2x32x16xf32>
    %cst_3 = arith.constant dense<0.000000e+00> : vector<2x32xf32>
    %2 = vector.multi_reduction <add>, %1, %cst_3 [2] : vector<2x32x16xf32> to vector<2x32xf32>
    %c0_i32 = arith.constant 0 : i32
    %3 = arith.cmpi eq, %arg1, %c0_i32 : i32
    %4 = arith.extui %3 : i1 to i32
    %c0_i32_4 = arith.constant 0 : i32
    %5 = arith.cmpi ne, %4, %c0_i32_4 : i32
    scf.if %5 {
      %cst_11 = arith.constant 0.000000e+00 : f32
      %12 = vector.broadcast %cst_11 : f32 to vector<2x32xf32>
      %c0_12 = arith.constant 0 : index
      %c0_13 = arith.constant 0 : index
      %13 = vector.load %arg5[%c0_12, %c0_13] : memref<2x32xf32, #tpu.memory_space<vmem>>, vector<2x32xf32>
      tpu.vector_store %arg5[%c0_12, %c0_13], %12 {strides = array<i32>} : memref<2x32xf32, #tpu.memory_space<vmem>>, vector<2x32xf32>,
    } else {
    }
    %c0_5 = arith.constant 0 : index
    %c0_6 = arith.constant 0 : index
    %6 = vector.load %arg5[%c0_5, %c0_6] : memref<2x32xf32, #tpu.memory_space<vmem>>, vector<2x32xf32>
    %7 = arith.addf %6, %2 : vector<2x32xf32>
    %c0_7 = arith.constant 0 : index
    %c0_8 = arith.constant 0 : index
    %8 = vector.load %arg5[%c0_7, %c0_8] : memref<2x32xf32, #tpu.memory_space<vmem>>, vector<2x32xf32>
    tpu.vector_store %arg5[%c0_7, %c0_8], %7 {strides = array<i32>} : memref<2x32xf32, #tpu.memory_space<vmem>>, vector<2x32xf32>,
    %c0_i32_9 = arith.constant 0 : i32
    %9 = arith.cmpi eq, %arg1, %c0_i32_9 : i32
    %10 = arith.extui %9 : i1 to i32
    %c0_i32_10 = arith.constant 0 : i32
    %11 = arith.cmpi ne, %10, %c0_i32_10 : i32
    scf.if %11 {
      %c0_11 = arith.constant 0 : index
      %c0_12 = arith.constant 0 : index
      %12 = vector.load %arg5[%c0_11, %c0_12] : memref<2x32xf32, #tpu.memory_space<vmem>>, vector<2x32xf32>
      %cst_13 = arith.constant 3.125000e-02 : f32
      %13 = vector.broadcast %cst_13 : f32 to vector<2x32xf32>
      %14 = arith.mulf %12, %13 : vector<2x32xf32>
      %c0_14 = arith.constant 0 : index
      %c0_15 = arith.constant 0 : index
      %15 = vector.load %arg5[%c0_14, %c0_15] : memref<2x32xf32, #tpu.memory_space<vmem>>, vector<2x32xf32>
      tpu.vector_store %arg5[%c0_14, %c0_15], %14 {strides = array<i32>} : memref<2x32xf32, #tpu.memory_space<vmem>>, vector<2x32xf32>,
      %c0_16 = arith.constant 0 : index
      %c0_17 = arith.constant 0 : index
      %16 = vector.load %arg3[%c0_16, %c0_17] : memref<32x10xf32, #tpu.memory_space<vmem>>, vector<32x10xf32>
      %cst_18 = arith.constant dense<0.000000e+00> : vector<2x10xf32>
      %17 = tpu.matmul %14, %16, %cst_18 {dimension_numbers = #tpu.dot_dimension_numbers<[1], [0], [0], [1], [0, 0, 1, 1], [], []>} : vector<2x32xf32>, vector<32x10xf32>, vector<2x10xf32> -> vector<2x10xf32>
      %c0_19 = arith.constant 0 : index
      %c0_20 = arith.constant 0 : index
      %18 = vector.load %arg4[%c0_19, %c0_20] : memref<1x10xf32, #tpu.memory_space<vmem>>, vector<1x10xf32>
      %19 = vector.broadcast %18 : vector<1x10xf32> to vector<2x10xf32>
      %20 = arith.addf %17, %19 : vector<2x10xf32>
      %c0_21 = arith.constant 0 : index
      %c0_22 = arith.constant 0 : index
      %21 = vector.load %arg6[%c0_21, %c0_22] : memref<2x10xf32, #tpu.memory_space<vmem>>, vector<2x10xf32>
      tpu.vector_store %arg6[%c0_21, %c0_22], %20 {strides = array<i32>} : memref<2x10xf32, #tpu.memory_space<vmem>>, vector<2x10xf32>,
    } else {
    }
    return
  }
  func.func @transform_0(%arg0: i32, %arg1: i32) -> (i32, i32, i32, i32) {
    %c0_i32 = arith.constant 0 : i32
    %c0_i32_0 = arith.constant 0 : i32
    %c0_i32_1 = arith.constant 0 : i32
    return %arg0, %arg1, %c0_i32, %c0_i32_0 : i32, i32, i32, i32
  }
  func.func @transform_1(%arg0: i32, %arg1: i32) -> (i32, i32) {
    %c0_i32 = arith.constant 0 : i32
    %c0_i32_0 = arith.constant 0 : i32
    %c0_i32_1 = arith.constant 0 : i32
    return %c0_i32, %c0_i32_0 : i32, i32
  }
  func.func @transform_2(%arg0: i32, %arg1: i32) -> (i32, i32) {
    %c0_i32 = arith.constant 0 : i32
    %c0_i32_0 = arith.constant 0 : i32
    %c0_i32_1 = arith.constant 0 : i32
    return %c0_i32, %c0_i32_0 : i32, i32
  }
  func.func @transform_3(%arg0: i32, %arg1: i32) -> (i32, i32) {
    %c0_i32 = arith.constant 0 : i32
    %c0_i32_0 = arith.constant 0 : i32
    return %arg0, %c0_i32 : i32, i32
  }
  func.func @transform_4(%arg0: i32, %arg1: i32) -> (i32, i32) {
    %c0_i32 = arith.constant 0 : i32
    %c0_i32_0 = arith.constant 0 : i32
    return %arg0, %c0_i32 : i32, i32
  }
}

</mosaic_0001>

<llo_original>
// kernel: tpu_custom_call.1
$region0: #{tpu_custom_call.1}
  #allocation0 [shape = 'u32[]', space=smem, size = 0x4, offset = 0x4, fixed_abs, tag = 'smem constant byte address 0x4 - core index']
  #allocation1 [shape = 'u32[144,128]{1,0:T(1,128)}', space=vmem, size = 0x12000, scoped, tag = 'internal scratch']
  %s0 = inlined_call_operand.vmem [shape: f32[2,2,32,16], index: 0, kind: input, shape index: {}]
  %s1 = inlined_call_operand.vmem [shape: f32[32,10], index: 1, kind: input, shape index: {}]
  %s2 = inlined_call_operand.vmem [shape: f32[1,10], index: 2, kind: input, shape index: {}]
  %s3 = inlined_call_operand.hbm [shape: f32[2,32], index: 3, kind: output, shape index: {0}]
  %s4 = inlined_call_operand.hbm [shape: f32[2,10], index: 4, kind: output, shape index: {1}]
  %5 = xla_tuple %s3, %s4
  %s6 = sld [smem:[#allocation0]]
  $region38: #{tpu_custom_call.1} parent=0
    _
  %s8 = ssub.s32 1, %s6
  %s9 = scalar_select 0, %s8, %s6
  $region1: #{tpu_custom_call.1} parent=0
    #allocation2 [shape = 'u8[1024]{0}', space=vmem, size = 0x400, scoped, tag = 'output window, operand 0, single buffered']
    #allocation3 [shape = 's32[1]{0}', space=sflag, size = 0x4, scoped, tag = 'scoped memory for tpu_custom_call.1']
    #allocation4 [shape = 'u8[1024]{0}', space=vmem, size = 0x400, scoped, tag = 'output window, operand 1, single buffered']
    #allocation5 [shape = 's32[1]{0}', space=sflag, size = 0x4, scoped, tag = 'scoped memory for tpu_custom_call.1']
    %10 = vsyncpa [#allocation3], 0
    %11 = vsyncpa [#allocation5], 0
    // Predicated region
    $region2: #{tpu_custom_call.1} parent=1 // pred_check
      _
    $region3: #{tpu_custom_call.1} parent=1 // pred_check_branch
      %13 = sbr.rel (0) target = $region5
    $region4: #{tpu_custom_call.1} parent=1 // pred_region
      _
    $region5: #{tpu_custom_call.1} parent=1 // pred_fallthru
      _
    // Predicated region
    $region6: #{tpu_custom_call.1} parent=1 // pred_check
      _
    $region7: #{tpu_custom_call.1} parent=1 // pred_check_branch
      %15 = sbr.rel (0) target = $region9
    $region8: #{tpu_custom_call.1} parent=1 // pred_region
      _
    $region9: #{tpu_custom_call.1} parent=1 // pred_fallthru
      _
    // Predicated region
    $region10: #{tpu_custom_call.1} parent=1 // pred_check
      _
    $region11: #{tpu_custom_call.1} parent=1 // pred_check_branch
      %17 = sbr.rel (0) target = $region13
    $region12: #{tpu_custom_call.1} parent=1 // pred_region
      _
    $region13: #{tpu_custom_call.1} parent=1 // pred_fallthru
      _
    %v18 = vld [vmem:[%s0] sm:$0xff]
    %v19 = vld [vmem:[%s0 + $0x8] sm:$0xff]
    %v20 = vld [vmem:[%s0 + $0x10] sm:$0xff]
    %v21 = vld [vmem:[%s0 + $0x18] sm:$0xff]
    %v22 = vld [vmem:[%s0 + $0x20] sm:$0xff]
    %v23 = vld [vmem:[%s0 + $0x28] sm:$0xff]
    %v24 = vld [vmem:[%s0 + $0x30] sm:$0xff]
    %v25 = vld [vmem:[%s0 + $0x38] sm:$0xff]
    %v26 = vld [vmem:[%s0 + $0x40] sm:$0xff]
    %v27 = vld [vmem:[%s0 + $0x48] sm:$0xff]
    %v28 = vld [vmem:[%s0 + $0x50] sm:$0xff]
    %v29 = vld [vmem:[%s0 + $0x58] sm:$0xff]
    %v30 = vld [vmem:[%s0 + $0x60] sm:$0xff]
    %v31 = vld [vmem:[%s0 + $0x68] sm:$0xff]
    %v32 = vld [vmem:[%s0 + $0x70] sm:$0xff]
    %v33 = vld [vmem:[%s0 + $0x78] sm:$0xff]
    %vm34 = vcmask 130048
    %v35 = vsel %vm34, %v18, 0.0
    %v36 = vsel %vm34, %v22, 0.0
    %v37 = vadd.f32 %v35, %v36
    %v38 = vsel %vm34, %v19, 0.0
    %v39 = vsel %vm34, %v23, 0.0
    %v40 = vadd.f32 %v38, %v39
    %v41 = vsel %vm34, %v20, 0.0
    %v42 = vsel %vm34, %v24, 0.0
    %v43 = vadd.f32 %v41, %v42
    %v44 = vsel %vm34, %v21, 0.0
    %v45 = vsel %vm34, %v25, 0.0
    %v46 = vadd.f32 %v44, %v45
    %v47 = vsel %vm34, %v26, 0.0
    %v48 = vsel %vm34, %v30, 0.0
    %v49 = vadd.f32 %v47, %v48
    %v50 = vsel %vm34, %v27, 0.0
    %v51 = vsel %vm34, %v31, 0.0
    %v52 = vadd.f32 %v50, %v51
    %v53 = vsel %vm34, %v28, 0.0
    %v54 = vsel %vm34, %v32, 0.0
    %v55 = vadd.f32 %v53, %v54
    %v56 = vsel %vm34, %v29, 0.0
    %v57 = vsel %vm34, %v33, 0.0
    %v58 = vadd.f32 %v56, %v57
    %v59 = vsel %vm34, %v37, 0.0
    %60 = vadd.xlane.f32.xlu0 %v59
    %v61 = vpop.xlane.xlu0 %60
    %v62 = vsel %vm34, %v40, 0.0
    %63 = vadd.xlane.f32.xlu0 %v62
    %v64 = vpop.xlane.xlu0 %63
    %v65 = vsel %vm34, %v43, 0.0
    %66 = vadd.xlane.f32.xlu0 %v65
    %v67 = vpop.xlane.xlu0 %66
    %v68 = vsel %vm34, %v46, 0.0
    %69 = vadd.xlane.f32.xlu0 %v68
    %v70 = vpop.xlane.xlu0 %69
    %v71 = vsel %vm34, %v49, 0.0
    %72 = vadd.xlane.f32.xlu0 %v71
    %v73 = vpop.xlane.xlu0 %72
    %v74 = vsel %vm34, %v52, 0.0
    %75 = vadd.xlane.f32.xlu0 %v74
    %v76 = vpop.xlane.xlu0 %75
    %v77 = vsel %vm34, %v55, 0.0
    %78 = vadd.xlane.f32.xlu0 %v77
    %v79 = vpop.xlane.xlu0 %78
    %v80 = vsel %vm34, %v58, 0.0
    %81 = vadd.xlane.f32.xlu0 %v80
    %v82 = vpop.xlane.xlu0 %81
    %p83 = scmp.eq.s32.totalorder 0, 0
    // Predicated region
    $region14: #{tpu_custom_call.1} parent=1 // pred_check
      %p84 = pneg %p83
    $region15: #{tpu_custom_call.1} parent=1 // pred_check_branch
      %86 = sbr.rel (%p84) target = $region17
    $region16: #{tpu_custom_call.1} parent=1 // pred_region
      %vm87 = vcmask 254976
      %88 = vst.msk [vmem:[#allocation2] sm:$0x3] %vm87, 0.0
    $region17: #{tpu_custom_call.1} parent=1 // pred_fallthru
      _
    %v89 = vld [vmem:[#allocation2] sm:$0x3]
    %v98 = vlaneseq
    %v99 = vand.u32 %v98, 127
    %v100 = vlaneseq
    %v101 = vshrl.u32 %v100, 7
    %v102 = vsub.s32 %v99, %v101
    %v103 = vrot.slane %v61, %v102
    %v104 = vadd.s32 %v99, 4294967288
    %v105 = vlaneseq
    %v106 = vshrl.u32 %v105, 7
    %v107 = vsub.s32 %v104, %v106
    %v108 = vrot.slane %v64, %v107
    %vm109 = vcmask 130112
    %v110 = vsel %vm109, %v108, %v103
    %v111 = vadd.s32 %v99, 4294967280
    %v112 = vlaneseq
    %v113 = vshrl.u32 %v112, 7
    %v114 = vsub.s32 %v111, %v113
    %v115 = vrot.slane %v67, %v114
    %vm116 = vcmask 195712
    %v117 = vsel %vm116, %v115, %v110
    %v118 = vadd.s32 %v99, 4294967272
    %v119 = vlaneseq
    %v120 = vshrl.u32 %v119, 7
    %v121 = vsub.s32 %v118, %v120
    %v122 = vrot.slane %v70, %v121
    %vm123 = vcmask 261312
    %v124 = vsel %vm123, %v122, %v117
    %v125 = vlaneseq
    %v126 = vshrl.u32 %v125, 7
    %v127 = vsub.s32 %v99, %v126
    %v128 = vrot.slane %v73, %v127
    %v129 = vlaneseq
    %v130 = vshrl.u32 %v129, 7
    %v131 = vsub.s32 %v104, %v130
    %v132 = vrot.slane %v76, %v131
    %v133 = vsel %vm109, %v132, %v128
    %v134 = vlaneseq
    %v135 = vshrl.u32 %v134, 7
    %v136 = vsub.s32 %v111, %v135
    %v137 = vrot.slane %v79, %v136
    %v138 = vsel %vm116, %v137, %v133
    %v139 = vlaneseq
    %v140 = vshrl.u32 %v139, 7
    %v141 = vsub.s32 %v118, %v140
    %v142 = vrot.slane %v82, %v141
    %v143 = vsel %vm123, %v142, %v138
    %vm144 = vcmask 1041409
    %v145 = vsel %vm144, %v143, %v124
    %v147 = vadd.f32 %v89, %v145
    %vm148 = vcmask 254976
    %149 = vst.msk [vmem:[#allocation2] sm:$0x3] %vm148, %v147
    // Predicated region
    $region18: #{tpu_custom_call.1} parent=1 // pred_check
      %p150 = pneg %p83
    $region19: #{tpu_custom_call.1} parent=1 // pred_check_branch
      %152 = sbr.rel (%p150) target = $region21
    $region20: #{tpu_custom_call.1} parent=1 // pred_region
      %v153 = vld [vmem:[#allocation2] sm:$0x3]
      %v154 = vmul.f32 %v153, 0.03125
      %155 = vst.msk [vmem:[#allocation2] sm:$0x3] %vm148, %v154
      %v156 = vld [vmem:[%s1] sm:$0xff]
      %v157 = vld [vmem:[%s1 + $0x8] sm:$0xff]
      %v158 = vld [vmem:[%s1 + $0x10] sm:$0xff]
      %v159 = vld [vmem:[%s1 + $0x18] sm:$0xff]
      %v160 = vld [vmem:[%s2] sm:$0x1]
      %v162 = vlaneseq
      %v163 = vshrl.u32 %v162, 7
      %v164 = vsub.s32 0, %v163
      %v165 = vrot.slane %v160, %v164
      %vm167 = vcmask 261120
      %v169 = vsel %vm167, %v154, 0
      %171 = vmatprep.subr.mxu0 0.0
      %172 = vmatpush1.msra.mxu0 0.0
      %173 = vmatprep.subr.mxu0 0.0
      %174 = vmatpush1.msra.mxu0 0.0
      %175 = vmatprep.subr.mxu0 0.0
      %176 = vmatpush1.msra.mxu0 0.0
      %177 = vmatprep.subr.mxu0 0.0
      %178 = vmatpush1.msra.mxu0 0.0
      %179 = vmatprep.subr.mxu0 0.0
      %180 = vmatpush1.msra.mxu0 0.0
      %181 = vmatprep.subr.mxu0 0.0
      %182 = vmatpush1.msra.mxu0 0.0
      %183 = vmatprep.subr.mxu0 0.0
      %184 = vmatpush1.msra.mxu0 0.0
      %185 = vmatprep.subr.mxu0 0.0
      %186 = vmatpush1.msra.mxu0 0.0
      %187 = vmatprep.subr.mxu0 0.0
      %188 = vmatpush1.msra.mxu0 0.0
      %189 = vmatprep.subr.mxu0 0.0
      %190 = vmatpush1.msra.mxu0 0.0
      %191 = vmatprep.subr.mxu0 0.0
      %192 = vmatpush1.msra.mxu0 0.0
      %193 = vmatprep.subr.mxu0 0.0
      %194 = vmatpush1.msra.mxu0 0.0
      %195 = vmatprep.subr.mxu0 0.0
      %196 = vmatpush1.msra.mxu0 %v159
      %197 = vmatprep.subr.mxu0 0.0
      %198 = vmatpush1.msra.mxu0 %v158
      %199 = vmatprep.subr.mxu0 0.0
      %200 = vmatpush1.msra.mxu0 %v157
      %201 = vmatprep.subr.mxu0 0.0
      %202 = vmatpush1.msra.mxu0 %v156
      %203 = vmatprep.subr.mxu0 0.0
      %204 = vmatpush2.msra.mxu0 0.0
      %205 = vmatprep.subr.mxu0 0.0
      %206 = vmatpush2.msra.mxu0 0.0
      %207 = vmatprep.subr.mxu0 0.0
      %208 = vmatpush2.msra.mxu0 0.0
      %209 = vmatprep.subr.mxu0 0.0
      %210 = vmatpush2.msra.mxu0 0.0
      %211 = vmatprep.subr.mxu0 0.0
      %212 = vmatpush2.msra.mxu0 0.0
      %213 = vmatprep.subr.mxu0 0.0
      %214 = vmatpush2.msra.mxu0 0.0
      %215 = vmatprep.subr.mxu0 0.0
      %216 = vmatpush2.msra.mxu0 0.0
      %217 = vmatprep.subr.mxu0 0.0
      %218 = vmatpush2.msra.mxu0 0.0
      %219 = vmatprep.subr.mxu0 0.0
      %220 = vmatpush2.msra.mxu0 0.0
      %221 = vmatprep.subr.mxu0 0.0
      %222 = vmatpush2.msra.mxu0 0.0
      %223 = vmatprep.subr.mxu0 0.0
      %224 = vmatpush2.msra.mxu0 0.0
      %225 = vmatprep.subr.mxu0 0.0
      %226 = vmatpush2.msra.mxu0 0.0
      %227 = vmatprep.subr.mxu0 0.0
      %228 = vmatpush2.msra.mxu0 0.0
      %229 = vmatprep.subr.mxu0 0.0
      %230 = vmatpush2.msra.mxu0 0.0
      %231 = vmatprep.subr.mxu0 0.0
      %232 = vmatpush2.msra.mxu0 0.0
      %233 = vmatprep.subr.mxu0 0.0
      %234 = vmatpush2.msra.mxu0 0.0
      %235 = vmatprep.mubr.f32.mxu0 0.0
      %236 = vmatmul.mubr.f32.gmra.mxu0 %v169
      %v237 = vpop.f32.mrf.mxu0
      %v238 = vadd.f32 %v165, %v237
      %v239 = vpop.f32.mrf.mxu0
      %240 = vdwg.mxu0
      %vm241 = vcmask 74752
      %242 = vst.msk [vmem:[#allocation4] sm:$0x3] %vm241, %v238
    $region21: #{tpu_custom_call.1} parent=1 // pred_fallthru
      _
    // Predicated region
    $region22: #{tpu_custom_call.1} parent=1 // pred_check
      _
    $region23: #{tpu_custom_call.1} parent=1 // pred_check_branch
      %244 = sbr.rel (0) target = $region25
    $region24: #{tpu_custom_call.1} parent=1 // pred_region
      %s246 = ssub.s32 32, 32
      %247 = vsyncadd [#allocation3], %s246
      %s249 = sshll.u32 [#allocation2], 4
      %s250 = int_to_ptr.vmem [resolvable:$true] %s249
      %252 = dma.vmem_to_hbm [thread:$0]  %s250, 32, %s3, [#allocation3]
    $region25: #{tpu_custom_call.1} parent=1 // pred_fallthru
      _
    // Predicated region
    $region26: #{tpu_custom_call.1} parent=1 // pred_check
      _
    $region27: #{tpu_custom_call.1} parent=1 // pred_check_branch
      %254 = sbr.rel (0) target = $region29
    $region28: #{tpu_custom_call.1} parent=1 // pred_region
      %s256 = ssub.s32 32, 32
      %257 = vsyncadd [#allocation5], %s256
      %s259 = sshll.u32 [#allocation4], 4
      %s260 = int_to_ptr.vmem [resolvable:$true] %s259
      %262 = dma.vmem_to_hbm [thread:$0]  %s260, 32, %s4, [#allocation5]
    $region29: #{tpu_custom_call.1} parent=1 // pred_fallthru
      _
    // Predicated region
    $region30: #{tpu_custom_call.1} parent=1 // pred_check
      _
    $region31: #{tpu_custom_call.1} parent=1 // pred_check_branch
      %264 = sbr.rel (0) target = $region33
    $region32: #{tpu_custom_call.1} parent=1 // pred_region
      %265 = dma.done [#allocation3], 32
    $region33: #{tpu_custom_call.1} parent=1 // pred_fallthru
      _
    // Predicated region
    $region34: #{tpu_custom_call.1} parent=1 // pred_check
      _
    $region35: #{tpu_custom_call.1} parent=1 // pred_check_branch
      %267 = sbr.rel (0) target = $region37
    $region36: #{tpu_custom_call.1} parent=1 // pred_region
      %268 = dma.done [#allocation5], 32
    $region37: #{tpu_custom_call.1} parent=1 // pred_fallthru
      _
    %269 = vsyncpa [#allocation3], 1
    %270 = vsyncpa [#allocation5], 1

</llo_original>
